<compile_context>
chip_gen: v5e
topology: v5e:2x2
jax: 0.10.0
libtpu: 0.0.40
codegen_flags: <defaults>
</compile_context>

<pallas_src>
import jax
import jax.numpy as jnp
from jax.experimental import pallas as pl
from jax.experimental.pallas import tpu as pltpu


def _round_up(x, m):
    return (x + m - 1) // m * m


# ----------------------------------------------------------------------------
# Kernel 1: DC component only  — sum(|A @ B|); W never written to HBM.
# Row-tiled over out_features; f32 accumulation into a resident (1,1) output.
# Runs once per LoRA pair at __init__ (weights are static), so its cost is
# irrelevant to the forward path.
# ----------------------------------------------------------------------------
def _dc_kernel(a_ref, b_ref, dc_ref):
    @pl.when(pl.program_id(0) == 0)
    def _():
        dc_ref[...] = jnp.zeros_like(dc_ref)

    w = jnp.dot(a_ref[...], b_ref[...], preferred_element_type=jnp.float32)
    # fft2(|W|)[0,0] is the (real, non-negative) sum of |W|  ->  abs-sum.
    dc_ref[...] = dc_ref[...] + jnp.sum(jnp.abs(w)).reshape(1, 1)


def dc_abs_sum(a, b, tile_o=256):
    """sum(|A @ B|) as an f32 device scalar (W never materialized in HBM)."""
    out_f, rank = a.shape
    rank_b, in_f = b.shape
    assert rank == rank_b
    to = min(tile_o, _round_up(out_f, 8))
    padded_o = _round_up(out_f, to)
    if padded_o != out_f:
        # zero rows contribute 0 to the abs-sum.
        a = jnp.pad(a, ((0, padded_o - out_f), (0, 0)))
    dc = pl.pallas_call(
        _dc_kernel,
        out_shape=jax.ShapeDtypeStruct((1, 1), jnp.float32),
        grid_spec=pltpu.PrefetchScalarGridSpec(
            num_scalar_prefetch=0,
            grid=(padded_o // to,),
            in_specs=[
                pl.BlockSpec((to, rank), lambda i: (i, 0)),
                pl.BlockSpec((rank, in_f), lambda i: (0, 0)),
            ],
            out_specs=pl.BlockSpec((1, 1), lambda i: (0, 0)),
        ),
        compiler_params=pltpu.CompilerParams(
            dimension_semantics=("arbitrary",)),
    )(a, b)
    return dc[0, 0]


# ----------------------------------------------------------------------------
# Kernel 2: fused low-rank projection.
#   t      = x_tile @ B^T     ([tn, rank], kept in vregs / f32 accumulation)
#   y_tile = t @ A^T          ([tn, out_fp], lane-dense output)
# No dense W is ever built; no scratch; no cross-step state.
# ----------------------------------------------------------------------------
def _lowrank_project_kernel(bt_ref, at_ref, x_ref, y_ref):
    t = jnp.dot(x_ref[...], bt_ref[...], preferred_element_type=jnp.float32)
    y_ref[...] = jnp.dot(
        t.astype(bt_ref.dtype), at_ref[...],
        preferred_element_type=jnp.float32).astype(y_ref.dtype)


def plora_lowrank_project(bt, at, x2d, tile_n=512):
    """y = (x2d @ B^T) @ A^T.

    bt: [in_f, rank]   (= B^T)
    at: [rank, out_fp] (= A^T, columns zero-padded to a 128-multiple)
    x2d: [N, in_f]
    Returns y: [N, out_fp] (caller slices off the out_f padding).
    """
    n, in_f = x2d.shape
    rank, out_fp = at.shape
    assert bt.shape == (in_f, rank)
    dtype = x2d.dtype
    itemsize = jnp.dtype(dtype).itemsize

    # Row tile: as large as possible, but keep double-buffered x/y tiles under
    # a conservative VMEM budget (fits v7x's 64 MiB / v5e scoped limits).
    tn = min(tile_n, _round_up(max(n, 1), 8))
    buf_budget = 32 << 20
    while tn > 8 and 2 * tn * (in_f + out_fp) * itemsize > buf_budget:
        tn //= 2
    tn = max(8, _round_up(tn, 8))
    grid_n = pl.cdiv(n, tn)           # ragged last tile handled by Pallas.

    vmem_bytes = int(1.5 * itemsize *
                     (2 * tn * in_f + 2 * tn * out_fp
                      + in_f * rank + rank * out_fp)) + (4 << 20)
    vmem_bytes = min(max(vmem_bytes, 16 << 20), 64 << 20)

    y = pl.pallas_call(
        _lowrank_project_kernel,
        out_shape=jax.ShapeDtypeStruct((n, out_fp), dtype),
        grid_spec=pltpu.PrefetchScalarGridSpec(
            num_scalar_prefetch=0,
            grid=(grid_n,),
            in_specs=[
                # LoRA factors: constant index_map -> fetched once, resident.
                pl.BlockSpec((in_f, rank), lambda i: (0, 0)),
                pl.BlockSpec((rank, out_fp), lambda i: (0, 0)),
                # x: tiled + pipelined over N.
                pl.BlockSpec((tn, in_f), lambda i: (i, 0)),
            ],
            out_specs=pl.BlockSpec((tn, out_fp), lambda i: (i, 0)),
        ),
        # No cross-step state -> fully parallel over row tiles (v7x megacore).
        compiler_params=pltpu.CompilerParams(
            dimension_semantics=("parallel",),
            vmem_limit_bytes=vmem_bytes),
    )(bt, at, x2d)
    return y


# ----------------------------------------------------------------------------
# Module-level state (mirrors the PyTorch globals exactly — host-side floats,
# no per-call device work or device->host sync for the bookkeeping).
# TODO(synk): host-side Python globals keep eager semantics of the reference
# but make the layer non-jittable / unsafe under vmap-pmap, same as PyTorch.
# ----------------------------------------------------------------------------
SUM1 = 0.0
SUM2 = 0.0
glo_count = 0
temp_ratio = 2.0


class PLoRALinearLayer:
    def __init__(self, in_features, out_features, weight_1_a, weight_1_b,
                 weight_2_a, weight_2_b, average_ratio=1.0, rank=8,
                 alpha=1.5, beta=0.5, sum_timesteps=28000, pattern='s*',
                 dtype=None):
        self.weight_1_a = jnp.asarray(weight_1_a)   # [out_f, rank]
        self.weight_1_b = jnp.asarray(weight_1_b)   # [rank, in_f]
        self.weight_2_a = jnp.asarray(weight_2_a)
        self.weight_2_b = jnp.asarray(weight_2_b)
        self.average_ratio = average_ratio
        self.sum_timesteps = sum_timesteps
        self.out_features = out_features
        self.in_features = in_features
        self.forward_type = 'merge'
        self.pattern = pattern

        # Pre-transposed factors; A^T columns zero-padded to a 128 multiple so
        # the projection's output tiles are lane-dense (unmasked stores).
        out_fp = _round_up(out_features, 128)
        pad_o = out_fp - out_features
        self._out_fp = out_fp
        self._bt1 = self.weight_1_b.T                                   # [in_f, rank]
        self._at1 = jnp.pad(self.weight_1_a.T, ((0, 0), (0, pad_o)))    # [rank, out_fp]
        self._bt2 = self.weight_2_b.T
        self._at2 = jnp.pad(self.weight_2_a.T, ((0, 0), (0, pad_o)))

        # DC components (sum|A@B|) are constants of the static weights:
        # compute once with the reduction kernel and cache as host floats
        # (one-time sync at construction; zero per-call cost).
        self._dc1 = float(dc_abs_sum(self.weight_1_a, self.weight_1_b))
        self._dc2 = float(dc_abs_sum(self.weight_2_a, self.weight_2_b))

    def _get_klora_factors(self, timestep):
        """K-LoRA selection; returns (B^T, A^T) of the chosen LoRA pair."""
        global SUM1, SUM2, temp_ratio
        gamma = self.average_ratio
        SUM1 += self._dc1
        SUM2 += self._dc2
        scale = timestep / self.sum_timesteps
        if glo_count // 4 == 0:
            return self._bt1, self._at1
        if glo_count % 4 == 0:
            SUM1 = SUM1 * (1.0 - scale) * 1.3
            SUM2 = SUM2 * gamma
            temp_ratio = SUM1 / SUM2
            SUM1 = 0.0
            SUM2 = 0.0
        if temp_ratio > 1.0:
            return self._bt1, self._at1
        return self._bt2, self._at2

    def __call__(self, hidden_states):
        global glo_count
        orig_dtype = hidden_states.dtype
        dtype = self.weight_1_a.dtype
        if self.forward_type == 'merge':
            glo_count += 1
            bt, at = self._get_klora_factors(glo_count)
            if glo_count == 28000:
                glo_count = 0
        elif self.forward_type == 'weight_1':
            bt, at = self._bt1, self._at1
        elif self.forward_type == 'weight_2':
            bt, at = self._bt2, self._at2
        else:
            raise ValueError(self.forward_type)

        x = hidden_states.astype(dtype)
        lead_shape = x.shape[:-1]
        x2d = x.reshape((-1, x.shape[-1]))
        y2d = plora_lowrank_project(bt.astype(dtype), at.astype(dtype), x2d)
        y2d = y2d[:, :self.out_features]
        y = y2d.reshape(lead_shape + (self.out_features,))
        return y.astype(orig_dtype)


# ----------------------------------------------------------------------------
# Demo / self-test
# ----------------------------------------------------------------------------
if __name__ == "__main__":
    key = jax.random.PRNGKey(0)
    k1, k2, k3, k4, kx = jax.random.split(key, 5)

    in_features, out_features, rank = 32, 16, 8
    batch, seq = 2, 8

    weight_1_a = jax.random.normal(k1, (out_features, rank), jnp.float32) * 0.1
    weight_1_b = jax.random.normal(k2, (rank, in_features), jnp.float32) * 0.1
    weight_2_a = jax.random.normal(k3, (out_features, rank), jnp.float32) * 0.1
    weight_2_b = jax.random.normal(k4, (rank, in_features), jnp.float32) * 0.1

    x = jax.random.normal(kx, (batch, seq, in_features), jnp.float32)

    layer = PLoRALinearLayer(in_features, out_features,
                             weight_1_a, weight_1_b,
                             weight_2_a, weight_2_b,
                             average_ratio=1.0, rank=rank,
                             sum_timesteps=28000)

    out = layer(x)
    out = jax.block_until_ready(out)

    # Reference: first call -> glo_count == 1 -> glo_count // 4 == 0 -> matrix1
    w_ref = weight_1_a @ weight_1_b                      # [out_f, in_f]
    y_ref = jnp.einsum('bsd,od->bso', x, w_ref)
    assert out.shape == (batch, seq, out_features)
    assert jnp.allclose(out, y_ref, atol=1e-4, rtol=1e-4), "projection mismatch"

    # DC-component kernel check: fft2(|W|)[0,0] == sum(|W|)
    dc1 = jax.block_until_ready(dc_abs_sum(weight_1_a, weight_1_b))
    dc_ref = jnp.sum(jnp.abs(w_ref))
    assert jnp.allclose(dc1, dc_ref, atol=1e-4, rtol=1e-4), "DC mismatch"

    print("KERNEL_OK")
</pallas_src>

<mosaic_0001>
module attributes {stable_mosaic.version = 11 : i64} {
  func.func @_dc_kernel(%arg0: i32, %arg1: memref<16x8xf32, #tpu.memory_space<vmem>>, %arg2: memref<8x32xf32, #tpu.memory_space<vmem>>, %arg3: memref<1x1xf32, #tpu.memory_space<vmem>>) attributes {dimension_semantics = [#tpu.dimension_semantics<arbitrary>], iteration_bounds = array<i64: 1>, scalar_prefetch = 0 : i64, scratch_operands = 0 : i64, tpu.core_type = #tpu.core_type<tc>, window_params = [{transform_indices = @transform_0, window_bounds = array<i64: 16, 8>}, {pipeline_mode = #tpu.pipeline_mode<synchronous>, transform_indices = @transform_1, window_bounds = array<i64: 8, 32>}, {pipeline_mode = #tpu.pipeline_mode<synchronous>, transform_indices = @transform_2, window_bounds = array<i64: 1, 1>}]} {
    %c0_i32 = arith.constant 0 : i32
    %0 = arith.cmpi eq, %arg0, %c0_i32 : i32
    %1 = arith.extui %0 : i1 to i32
    %c0_i32_0 = arith.constant 0 : i32
    %2 = arith.cmpi ne, %1, %c0_i32_0 : i32
    scf.if %2 {
      %cst_9 = arith.constant 0.000000e+00 : f32
      %15 = vector.broadcast %cst_9 : f32 to vector<1x1xf32>
      %c0_10 = arith.constant 0 : index
      %c0_11 = arith.constant 0 : index
      %16 = vector.load %arg3[%c0_10, %c0_11] : memref<1x1xf32, #tpu.memory_space<vmem>>, vector<1x1xf32>
      tpu.vector_store %arg3[%c0_10, %c0_11], %15 {strides = array<i32>} : memref<1x1xf32, #tpu.memory_space<vmem>>, vector<1x1xf32>,
    } else {
    }
    %c0 = arith.constant 0 : index
    %c0_1 = arith.constant 0 : index
    %3 = vector.load %arg1[%c0, %c0_1] : memref<16x8xf32, #tpu.memory_space<vmem>>, vector<16x8xf32>
    %c0_2 = arith.constant 0 : index
    %c0_3 = arith.constant 0 : index
    %4 = vector.load %arg2[%c0_2, %c0_3] : memref<8x32xf32, #tpu.memory_space<vmem>>, vector<8x32xf32>
    %cst = arith.constant dense<0.000000e+00> : vector<16x32xf32>
    %5 = tpu.matmul %3, %4, %cst {dimension_numbers = #tpu.dot_dimension_numbers<[1], [0], [0], [1], [0, 0, 1, 1], [], []>} : vector<16x8xf32>, vector<8x32xf32>, vector<16x32xf32> -> vector<16x32xf32>
    %c0_4 = arith.constant 0 : index
    %c0_5 = arith.constant 0 : index
    %6 = vector.load %arg3[%c0_4, %c0_5] : memref<1x1xf32, #tpu.memory_space<vmem>>, vector<1x1xf32>
    %7 = math.absf %5 : vector<16x32xf32>
    %8 = vector.shape_cast %7 : vector<16x32xf32> to vector<1x16x32xf32>
    %cst_6 = arith.constant dense<0.000000e+00> : vector<1xf32>
    %9 = vector.multi_reduction <add>, %8, %cst_6 [1, 2] : vector<1x16x32xf32> to vector<1xf32>
    %10 = vector.shape_cast %9 : vector<1xf32> to vector<1x1x1xf32>
    %11 = vector.extract %10[0, 0, 0] : f32 from vector<1x1x1xf32>
    %12 = vector.broadcast %11 : f32 to vector<1x1xf32>
    %13 = arith.addf %6, %12 : vector<1x1xf32>
    %c0_7 = arith.constant 0 : index
    %c0_8 = arith.constant 0 : index
    %14 = vector.load %arg3[%c0_7, %c0_8] : memref<1x1xf32, #tpu.memory_space<vmem>>, vector<1x1xf32>
    tpu.vector_store %arg3[%c0_7, %c0_8], %13 {strides = array<i32>} : memref<1x1xf32, #tpu.memory_space<vmem>>, vector<1x1xf32>,
    return
  }
  func.func @transform_0(%arg0: i32) -> (i32, i32) {
    %c0_i32 = arith.constant 0 : i32
    %c0_i32_0 = arith.constant 0 : i32
    return %arg0, %c0_i32 : i32, i32
  }
  func.func @transform_1(%arg0: i32) -> (i32, i32) {
    %c0_i32 = arith.constant 0 : i32
    %c0_i32_0 = arith.constant 0 : i32
    %c0_i32_1 = arith.constant 0 : i32
    return %c0_i32, %c0_i32_0 : i32, i32
  }
  func.func @transform_2(%arg0: i32) -> (i32, i32) {
    %c0_i32 = arith.constant 0 : i32
    %c0_i32_0 = arith.constant 0 : i32
    %c0_i32_1 = arith.constant 0 : i32
    return %c0_i32, %c0_i32_0 : i32, i32
  }
}

</mosaic_0001>

<llo_original>
// kernel: tpu_custom_call.1
$region0: #{tpu_custom_call.1}
  #allocation0 [shape = 'u32[]', space=smem, size = 0x4, offset = 0x4, fixed_abs, tag = 'smem constant byte address 0x4 - core index']
  #allocation1 [shape = 'u32[72,128]{1,0:T(1,128)}', space=vmem, size = 0x9000, scoped, tag = 'internal scratch']
  %s0 = inlined_call_operand.vmem [shape: f32[16,8], index: 0, kind: input, shape index: {}]
  %s1 = inlined_call_operand.vmem [shape: f32[8,32], index: 1, kind: input, shape index: {}]
  %s2 = inlined_call_operand.hbm [shape: f32[1,1], index: 2, kind: output, shape index: {}]
  %s3 = sld [smem:[#allocation0]]
  $region22: #{tpu_custom_call.1} parent=0
    _
  %s5 = ssub.s32 1, %s3
  %s6 = scalar_select 0, %s5, %s3
  $region1: #{tpu_custom_call.1} parent=0
    #allocation2 [shape = 'u8[512]{0}', space=vmem, size = 0x400, scoped, tag = 'output window, operand 0, single buffered']
    #allocation3 [shape = 's32[1]{0}', space=sflag, size = 0x4, scoped, tag = 'scoped memory for tpu_custom_call.1']
    %7 = vsyncpa [#allocation3], 0
    // Predicated region
    $region2: #{tpu_custom_call.1} parent=1 // pred_check
      _
    $region3: #{tpu_custom_call.1} parent=1 // pred_check_branch
      %9 = sbr.rel (0) target = $region5
    $region4: #{tpu_custom_call.1} parent=1 // pred_region
      _
    $region5: #{tpu_custom_call.1} parent=1 // pred_fallthru
      _
    // Predicated region
    $region6: #{tpu_custom_call.1} parent=1 // pred_check
      _
    $region7: #{tpu_custom_call.1} parent=1 // pred_check_branch
      %11 = sbr.rel (0) target = $region9
    $region8: #{tpu_custom_call.1} parent=1 // pred_region
      _
    $region9: #{tpu_custom_call.1} parent=1 // pred_fallthru
      _
    %p12 = scmp.eq.s32.totalorder 0, 0
    // Predicated region
    $region10: #{tpu_custom_call.1} parent=1 // pred_check
      %p13 = pneg %p12
    $region11: #{tpu_custom_call.1} parent=1 // pred_check_branch
      %15 = sbr.rel (%p13) target = $region13
    $region12: #{tpu_custom_call.1} parent=1 // pred_region
      %vm16 = vcmask 0
      %17 = vst.msk [vmem:[#allocation2] sm:$0x1] %vm16, 0.0
    $region13: #{tpu_custom_call.1} parent=1 // pred_fallthru
      _
    %v18 = vld [vmem:[%s0] sm:$0xff]
    %v19 = vld [vmem:[%s0 + $0x8] sm:$0xff]
    %v20 = vld [vmem:[%s1] sm:$0xff]
    %vm21 = vcmask 64512
    %v23 = vsel %vm21, %v18, 0
    %v26 = vsel %vm21, %v19, 0
    %28 = vmatpush.msra.mxu0 0.0
    %29 = vmatpush.msra.mxu0 0.0
    %30 = vmatpush.msra.mxu0 0.0
    %31 = vmatpush.msra.mxu0 0.0
    %32 = vmatpush.msra.mxu0 0.0
    %33 = vmatpush.msra.mxu0 0.0
    %34 = vmatpush.msra.mxu0 0.0
    %35 = vmatpush.msra.mxu0 0.0
    %36 = vmatpush.msra.mxu0 0.0
    %37 = vmatpush.msra.mxu0 0.0
    %38 = vmatpush.msra.mxu0 0.0
    %39 = vmatpush.msra.mxu0 0.0
    %40 = vmatpush.msra.mxu0 0.0
    %41 = vmatpush.msra.mxu0 0.0
    %42 = vmatpush.msra.mxu0 0.0
    %43 = vmatpush.msra.mxu0 %v20
    %44 = vmatmul.f32.gmra.mxu0 %v23
    %v45 = vpop.f32.mrf.mxu0
    %v46 = vadd.f32 0.0, %v45
    %47 = vmatmul.f32.gmra.mxu0 %v26
    %v48 = vpop.f32.mrf.mxu0
    %v49 = vadd.f32 0.0, %v48
    %50 = vdwg.mxu0
    %v51 = vld [vmem:[#allocation2] sm:$0x1]
    %v52 = vand.u32 2147483647, %v46
    %v53 = vand.u32 2147483647, %v49
    %vm54 = vcmask 261120
    %v55 = vsel %vm54, %v52, 0.0
    %v56 = vsel %vm54, %v53, 0.0
    %v57 = vadd.f32 %v55, %v56
    %58 = vadd.xlane.f32.xlu0 %v57
    %v59 = vpop.xlane.xlu0 %58
    %v60 = vrot.slane %v59, 4
    %v61 = vadd.f32 %v59, %v60
    %v62 = vrot.slane %v61, 2
    %v63 = vadd.f32 %v61, %v62
    %v64 = vrot.slane %v63, 1
    %v65 = vadd.f32 %v63, %v64
    %s66 = vtos %v65
    %v67 = vstv %s66
    %v68 = vadd.f32 %v51, %v67
    %vm69 = vcmask 0
    %70 = vst.msk [vmem:[#allocation2] sm:$0x1] %vm69, %v68
    // Predicated region
    $region14: #{tpu_custom_call.1} parent=1 // pred_check
      _
    $region15: #{tpu_custom_call.1} parent=1 // pred_check_branch
      %72 = sbr.rel (0) target = $region17
    $region16: #{tpu_custom_call.1} parent=1 // pred_region
      %74 = vsyncadd [#allocation3], 0
      %s76 = sshll.u32 [#allocation2], 4
      %s77 = int_to_ptr.vmem [resolvable:$true] %s76
      %s78 = sshll.u32 %s2, 4
      %s79 = int_to_ptr.hbm [resolvable:$true] %s78
      %81 = dma.vmem_to_hbm [thread:$0]  %s77, 16, %s79, [#allocation3]
    $region17: #{tpu_custom_call.1} parent=1 // pred_fallthru
      _
    // Predicated region
    $region18: #{tpu_custom_call.1} parent=1 // pred_check
      _
    $region19: #{tpu_custom_call.1} parent=1 // pred_check_branch
      %83 = sbr.rel (0) target = $region21
    $region20: #{tpu_custom_call.1} parent=1 // pred_region
      %85 = dma.done [#allocation3], 16
    $region21: #{tpu_custom_call.1} parent=1 // pred_fallthru
      _
    %86 = vsyncpa [#allocation3], 1

</llo_original>
